<compile_context>
chip_gen: v7x
topology: tpu7x:2x2x1
jax: 0.10.0
libtpu: 0.0.40
codegen_flags: <defaults>
</compile_context>

<pallas_src>
import functools

import jax
import jax.numpy as jnp
from jax.experimental import pallas as pl
from jax.experimental.pallas import tpu as pltpu


def _round_up(x: int, m: int) -> int:
    return ((x + m - 1) // m) * m


def _seq_label_kernel(x_ref, w1_ref, b1_ref, wh_ref, bh_ref, out_ref, hid_ref):
    # x_ref : (TM, H)   input dtype      w1_ref: (H, H2)  bf16      b1_ref: (1, H2)  f32
    # wh_ref: (H2, Np)  bf16  (both heads concatenated, lane-padded so Np % 128 == 0)
    # bh_ref: (1, Np)   f32
    # out_ref: (TM, Np) input dtype (lane-dense slab; sub/obj sliced out in the wrapper)
    # hid_ref: (TM, H2) bf16 staging scratch
    x = x_ref[...].astype(jnp.bfloat16)
    hid = jnp.dot(x, w1_ref[...], preferred_element_type=jnp.float32)
    # bias + ReLU in f32, single cast into the explicit bf16 staging scratch.
    hid_ref[...] = jnp.maximum(hid + b1_ref[...], 0.0).astype(jnp.bfloat16)
    # dropout: identity (eval mode)
    out = jnp.dot(hid_ref[...], wh_ref[...], preferred_element_type=jnp.float32)
    out_ref[...] = (out + bh_ref[...]).astype(out_ref.dtype)


def _choose_tiling(M, hidden, h2, n_pad, x_bytes, out_bytes, tm_max, single_buffer_weights):
    """Pick TM from an explicit VMEM budget; return (TM, vmem_limit_bytes)."""
    w_bufs = 1 if single_buffer_weights else 2
    resident = ((hidden * h2 + h2 * n_pad) * 2 + (h2 + n_pad) * 4) * w_bufs  # bf16 W, f32 b

    def footprint(tm):
        x_t = 2 * tm * hidden * x_bytes       # double-buffered x tiles
        o_t = 2 * tm * n_pad * out_bytes      # double-buffered out tiles
        hid = tm * h2 * (2 + 4)               # bf16 staging scratch + f32 matmul temp
        return resident + x_t + o_t + hid

    # Keep >= 2 grid tiles so v7x megacore can shard the row axis across both TensorCores.
    cap = max(8, _round_up(pl.cdiv(M, 2), 8))
    tm = max(8, (min(tm_max, cap) // 8) * 8)
    budget = 16 * 1024 * 1024                 # safe under every generation's default scoped VMEM
    while tm > 8 and footprint(tm) > budget:
        tm = max(8, ((tm // 2) // 8) * 8)
    vmem_limit = int(min(48 * 1024 * 1024, max(24 * 1024 * 1024, 2 * footprint(tm))))
    return tm, vmem_limit


@functools.partial(jax.jit, static_argnames=("tm", "single_buffer_weights"))
def _forward(input_features, params, tm, single_buffer_weights):
    bs, seq_len, hidden = input_features.shape
    w1, b1 = params["w1"], params["b1"]
    ws, bsub = params["ws"], params["bs"]
    wo, bobj = params["wo"], params["bo"]
    h2 = w1.shape[1]
    tag_size = ws.shape[1]
    out_dtype = input_features.dtype

    M = bs * seq_len
    x2d = input_features.reshape(M, hidden)          # native dtype; no pad, no upcast

    # Fuse the two heads into one lane-dense (h2, N_pad) matmul, N_pad a multiple of 128.
    N = 2 * tag_size
    N_pad = max(128, _round_up(N, 128))
    wh = jnp.pad(jnp.concatenate([ws, wo], axis=1), ((0, 0), (0, N_pad - N)))
    bh = jnp.pad(jnp.concatenate([bsub, bobj], axis=0), (0, N_pad - N))

    # Weights cast to bf16 once (MXU-native operands, half the resident VMEM / HBM bytes).
    w1_bf = w1.astype(jnp.bfloat16)
    wh_bf = wh.astype(jnp.bfloat16)
    b1_2d = b1.reshape(1, h2).astype(jnp.float32)
    bh_2d = bh.reshape(1, N_pad).astype(jnp.float32)

    x_bytes = jnp.dtype(x2d.dtype).itemsize
    out_bytes = jnp.dtype(out_dtype).itemsize
    TM, vmem_limit = _choose_tiling(M, hidden, h2, N_pad, x_bytes, out_bytes,
                                    tm, single_buffer_weights)
    grid = (pl.cdiv(M, TM),)   # ragged last block is masked by Pallas; no wrapper pad needed

    def _resident(shape):
        index_map = lambda i: (0,) * len(shape)
        if single_buffer_weights:
            # Constant block index -> one VMEM copy is enough; don't double-buffer weights.
            return pl.BlockSpec(shape, index_map, pipeline_mode=pl.Buffered(1))
        return pl.BlockSpec(shape, index_map)

    cost = pl.CostEstimate(
        flops=2 * M * (hidden * h2 + h2 * N_pad),
        transcendentals=0,
        bytes_accessed=(M * hidden * x_bytes + hidden * h2 * 2 + h2 * N_pad * 2
                        + h2 * 4 + N_pad * 4 + M * N_pad * out_bytes),
    )

    out2d = pl.pallas_call(
        _seq_label_kernel,
        out_shape=jax.ShapeDtypeStruct((M, N_pad), out_dtype),
        grid=grid,
        in_specs=[
            pl.BlockSpec((TM, hidden), lambda i: (i, 0)),   # x: tiled over rows
            _resident((hidden, h2)),                        # w1: VMEM-resident
            _resident((1, h2)),                             # b1
            _resident((h2, N_pad)),                         # fused tag heads
            _resident((1, N_pad)),                          # fused tag bias
        ],
        out_specs=pl.BlockSpec((TM, N_pad), lambda i: (i, 0)),
        scratch_shapes=[pltpu.VMEM((TM, h2), jnp.bfloat16)],  # explicit hid staging
        compiler_params=pltpu.CompilerParams(
            dimension_semantics=("parallel",),
            vmem_limit_bytes=vmem_limit),
        cost_estimate=cost,
    )(x2d, w1_bf, b1_2d, wh_bf, bh_2d)

    sub = out2d[:, :tag_size].reshape(bs, seq_len, tag_size)
    obj = out2d[:, tag_size:2 * tag_size].reshape(bs, seq_len, tag_size)
    return sub, obj


def sequence_label_for_ao(input_features, params, tm: int = 1024):
    """input_features: (bs, seq_len, hidden) -> (sub, obj), each (bs, seq_len, tag_size)."""
    try:
        return _forward(input_features, params, tm=tm, single_buffer_weights=True)
    except Exception:
        # Compatibility guard: if this jax build rejects pipeline_mode=pl.Buffered(1) on
        # pallas_call BlockSpecs, retrace with default double-buffered resident weights
        # (the VMEM budget in _choose_tiling accounts for the extra copy in that case).
        return _forward(input_features, params, tm=tm, single_buffer_weights=False)


def init_params(key, hidden_size, tag_size):
    h2 = hidden_size // 2
    ks = jax.random.split(key, 6)
    scale1 = 1.0 / jnp.sqrt(hidden_size)
    scale2 = 1.0 / jnp.sqrt(h2)
    return {
        "w1": jax.random.uniform(ks[0], (hidden_size, h2), jnp.float32, -scale1, scale1),
        "b1": jax.random.uniform(ks[1], (h2,), jnp.float32, -scale1, scale1),
        "ws": jax.random.uniform(ks[2], (h2, tag_size), jnp.float32, -scale2, scale2),
        "bs": jax.random.uniform(ks[3], (tag_size,), jnp.float32, -scale2, scale2),
        "wo": jax.random.uniform(ks[4], (h2, tag_size), jnp.float32, -scale2, scale2),
        "bo": jax.random.uniform(ks[5], (tag_size,), jnp.float32, -scale2, scale2),
    }


def _reference(x, params, matmul_dtype):
    """Plain-JAX reference; matmul_dtype selects f32 or bf16-operand matmuls."""
    bs, seq_len, hidden = x.shape
    tag_size = params["ws"].shape[1]
    x2 = x.reshape(-1, hidden)
    cast = lambda a: a.astype(matmul_dtype)
    hid = jnp.maximum(
        jnp.dot(cast(x2), cast(params["w1"]), preferred_element_type=jnp.float32)
        + params["b1"], 0.0)
    sub = (jnp.dot(cast(hid), cast(params["ws"]), preferred_element_type=jnp.float32)
           + params["bs"]).reshape(bs, seq_len, tag_size)
    obj = (jnp.dot(cast(hid), cast(params["wo"]), preferred_element_type=jnp.float32)
           + params["bo"]).reshape(bs, seq_len, tag_size)
    return sub, obj


def _check(x, params):
    sub_out, obj_out = sequence_label_for_ao(x, params)
    jax.block_until_ready((sub_out, obj_out))
    # Tight check against a bf16-operand reference (same matmul precision as the kernel).
    sub_bf, obj_bf = _reference(x, params, jnp.bfloat16)
    assert jnp.allclose(sub_out, sub_bf, atol=1e-3, rtol=1e-3), "sub mismatch (bf16 ref)"
    assert jnp.allclose(obj_out, obj_bf, atol=1e-3, rtol=1e-3), "obj mismatch (bf16 ref)"
    # Loose check against the full-f32 reference (bf16 operand rounding tolerance).
    sub_f32, obj_f32 = _reference(x, params, jnp.float32)
    assert jnp.allclose(sub_out, sub_f32, atol=5e-2, rtol=5e-2), "sub mismatch (f32 ref)"
    assert jnp.allclose(obj_out, obj_f32, atol=5e-2, rtol=5e-2), "obj mismatch (f32 ref)"


if __name__ == "__main__":
    bs, seq_len, hidden_size, tag_size = 2, 8, 32, 5
    key = jax.random.PRNGKey(0)
    k_in, k_p, k_in2 = jax.random.split(key, 3)
    params = init_params(k_p, hidden_size, tag_size)

    # Even row count (grid divides evenly).
    x = jax.random.normal(k_in, (bs, seq_len, hidden_size), jnp.float32)
    _check(x, params)

    # Ragged row count (M = 14 not a multiple of the 8-row tile): exercises the
    # pad-free masked last block.
    x_ragged = jax.random.normal(k_in2, (bs, 7, hidden_size), jnp.float32)
    _check(x_ragged, params)

    print("KERNEL_OK")
</pallas_src>

<mosaic_0001>
module attributes {stable_mosaic.version = 11 : i64} {
  func.func @_seq_label_kernel(%arg0: i32, %arg1: memref<8x32xf32, #tpu.memory_space<vmem>>, %arg2: memref<32x16xbf16, #tpu.memory_space<vmem>>, %arg3: memref<1x16xf32, #tpu.memory_space<vmem>>, %arg4: memref<16x128xbf16, #tpu.memory_space<vmem>>, %arg5: memref<1x128xf32, #tpu.memory_space<vmem>>, %arg6: memref<8x128xf32, #tpu.memory_space<vmem>>, %arg7: memref<8x16xbf16, #tpu.memory_space<vmem>>) attributes {dimension_semantics = [#tpu.dimension_semantics<parallel>], iteration_bounds = array<i64: 2>, scalar_prefetch = 0 : i64, scratch_operands = 1 : i64, tpu.core_type = #tpu.core_type<tc>, window_params = [{transform_indices = @transform_0, window_bounds = array<i64: 8, 32>}, {pipeline_mode = #tpu.pipeline_mode<synchronous>, transform_indices = @transform_1, window_bounds = array<i64: 32, 16>}, {pipeline_mode = #tpu.pipeline_mode<synchronous>, transform_indices = @transform_2, window_bounds = array<i64: 1, 16>}, {pipeline_mode = #tpu.pipeline_mode<synchronous>, transform_indices = @transform_3, window_bounds = array<i64: 16, 128>}, {pipeline_mode = #tpu.pipeline_mode<synchronous>, transform_indices = @transform_4, window_bounds = array<i64: 1, 128>}, {transform_indices = @transform_5, window_bounds = array<i64: 8, 128>}]} {
    %c0 = arith.constant 0 : index
    %c0_0 = arith.constant 0 : index
    %0 = vector.load %arg1[%c0, %c0_0] : memref<8x32xf32, #tpu.memory_space<vmem>>, vector<8x32xf32>
    %1 = arith.truncf %0 : vector<8x32xf32> to vector<8x32xbf16>
    %c0_1 = arith.constant 0 : index
    %c0_2 = arith.constant 0 : index
    %2 = vector.load %arg2[%c0_1, %c0_2] : memref<32x16xbf16, #tpu.memory_space<vmem>>, vector<32x16xbf16>
    %cst = arith.constant dense<0.000000e+00> : vector<8x16xf32>
    %3 = tpu.matmul %1, %2, %cst {dimension_numbers = #tpu.dot_dimension_numbers<[1], [0], [0], [1], [0, 0, 1, 1], [], []>} : vector<8x32xbf16>, vector<32x16xbf16>, vector<8x16xf32> -> vector<8x16xf32>
    %c0_3 = arith.constant 0 : index
    %c0_4 = arith.constant 0 : index
    %4 = vector.load %arg3[%c0_3, %c0_4] : memref<1x16xf32, #tpu.memory_space<vmem>>, vector<1x16xf32>
    %5 = vector.broadcast %4 : vector<1x16xf32> to vector<8x16xf32>
    %6 = arith.addf %3, %5 : vector<8x16xf32>
    %cst_5 = arith.constant 0.000000e+00 : f32
    %7 = vector.broadcast %cst_5 : f32 to vector<8x16xf32>
    %8 = arith.maximumf %6, %7 : vector<8x16xf32>
    %9 = arith.truncf %8 : vector<8x16xf32> to vector<8x16xbf16>
    %c0_6 = arith.constant 0 : index
    %c0_7 = arith.constant 0 : index
    %10 = vector.load %arg7[%c0_6, %c0_7] : memref<8x16xbf16, #tpu.memory_space<vmem>>, vector<8x16xbf16>
    tpu.vector_store %arg7[%c0_6, %c0_7], %9 {strides = array<i32>} : memref<8x16xbf16, #tpu.memory_space<vmem>>, vector<8x16xbf16>,
    %c0_8 = arith.constant 0 : index
    %c0_9 = arith.constant 0 : index
    %11 = vector.load %arg7[%c0_8, %c0_9] : memref<8x16xbf16, #tpu.memory_space<vmem>>, vector<8x16xbf16>
    %c0_10 = arith.constant 0 : index
    %c0_11 = arith.constant 0 : index
    %12 = vector.load %arg4[%c0_10, %c0_11] : memref<16x128xbf16, #tpu.memory_space<vmem>>, vector<16x128xbf16>
    %cst_12 = arith.constant dense<0.000000e+00> : vector<8x128xf32>
    %13 = tpu.matmul %11, %12, %cst_12 {dimension_numbers = #tpu.dot_dimension_numbers<[1], [0], [0], [1], [0, 0, 1, 1], [], []>} : vector<8x16xbf16>, vector<16x128xbf16>, vector<8x128xf32> -> vector<8x128xf32>
    %c0_13 = arith.constant 0 : index
    %c0_14 = arith.constant 0 : index
    %14 = vector.load %arg5[%c0_13, %c0_14] : memref<1x128xf32, #tpu.memory_space<vmem>>, vector<1x128xf32>
    %15 = vector.broadcast %14 : vector<1x128xf32> to vector<8x128xf32>
    %16 = arith.addf %13, %15 : vector<8x128xf32>
    %c0_15 = arith.constant 0 : index
    %c0_16 = arith.constant 0 : index
    %17 = vector.load %arg6[%c0_15, %c0_16] : memref<8x128xf32, #tpu.memory_space<vmem>>, vector<8x128xf32>
    tpu.vector_store %arg6[%c0_15, %c0_16], %16 {strides = array<i32>} : memref<8x128xf32, #tpu.memory_space<vmem>>, vector<8x128xf32>,
    return
  }
  func.func @transform_0(%arg0: i32) -> (i32, i32) {
    %c0_i32 = arith.constant 0 : i32
    %c0_i32_0 = arith.constant 0 : i32
    return %arg0, %c0_i32 : i32, i32
  }
  func.func @transform_1(%arg0: i32) -> (i32, i32) {
    %c0_i32 = arith.constant 0 : i32
    %c0_i32_0 = arith.constant 0 : i32
    %c0_i32_1 = arith.constant 0 : i32
    return %c0_i32, %c0_i32_0 : i32, i32
  }
  func.func @transform_2(%arg0: i32) -> (i32, i32) {
    %c0_i32 = arith.constant 0 : i32
    %c0_i32_0 = arith.constant 0 : i32
    %c0_i32_1 = arith.constant 0 : i32
    return %c0_i32, %c0_i32_0 : i32, i32
  }
  func.func @transform_3(%arg0: i32) -> (i32, i32) {
    %c0_i32 = arith.constant 0 : i32
    %c0_i32_0 = arith.constant 0 : i32
    %c0_i32_1 = arith.constant 0 : i32
    return %c0_i32, %c0_i32_0 : i32, i32
  }
  func.func @transform_4(%arg0: i32) -> (i32, i32) {
    %c0_i32 = arith.constant 0 : i32
    %c0_i32_0 = arith.constant 0 : i32
    %c0_i32_1 = arith.constant 0 : i32
    return %c0_i32, %c0_i32_0 : i32, i32
  }
  func.func @transform_5(%arg0: i32) -> (i32, i32) {
    %c0_i32 = arith.constant 0 : i32
    %c0_i32_0 = arith.constant 0 : i32
    return %arg0, %c0_i32 : i32, i32
  }
}

module attributes {stable_mosaic.version = 11 : i64} {
  func.func @_seq_label_kernel(%arg0: i32, %arg1: memref<8x32xf32, #tpu.memory_space<vmem>>, %arg2: memref<32x16xbf16, #tpu.memory_space<vmem>>, %arg3: memref<1x16xf32, #tpu.memory_space<vmem>>, %arg4: memref<16x128xbf16, #tpu.memory_space<vmem>>, %arg5: memref<1x128xf32, #tpu.memory_space<vmem>>, %arg6: memref<8x128xf32, #tpu.memory_space<vmem>>, %arg7: memref<8x16xbf16, #tpu.memory_space<vmem>>) attributes {dimension_semantics = [#tpu.dimension_semantics<parallel>], iteration_bounds = array<i64: 2>, scalar_prefetch = 0 : i64, scratch_operands = 1 : i64, tpu.core_type = #tpu.core_type<tc>, window_params = [{transform_indices = @transform_0, window_bounds = array<i64: 8, 32>}, {pipeline_mode = #tpu.pipeline_mode<synchronous>, transform_indices = @transform_1, window_bounds = array<i64: 32, 16>}, {pipeline_mode = #tpu.pipeline_mode<synchronous>, transform_indices = @transform_2, window_bounds = array<i64: 1, 16>}, {pipeline_mode = #tpu.pipeline_mode<synchronous>, transform_indices = @transform_3, window_bounds = array<i64: 16, 128>}, {pipeline_mode = #tpu.pipeline_mode<synchronous>, transform_indices = @transform_4, window_bounds = array<i64: 1, 128>}, {transform_indices = @transform_5, window_bounds = array<i64: 8, 128>}]} {
    %c0 = arith.constant 0 : index
    %c0_0 = arith.constant 0 : index
    %0 = vector.load %arg1[%c0, %c0_0] : memref<8x32xf32, #tpu.memory_space<vmem>>, vector<8x32xf32>
    %1 = arith.truncf %0 : vector<8x32xf32> to vector<8x32xbf16>
    %c0_1 = arith.constant 0 : index
    %c0_2 = arith.constant 0 : index
    %2 = vector.load %arg2[%c0_1, %c0_2] : memref<32x16xbf16, #tpu.memory_space<vmem>>, vector<32x16xbf16>
    %cst = arith.constant dense<0.000000e+00> : vector<8x16xf32>
    %3 = tpu.matmul %1, %2, %cst {dimension_numbers = #tpu.dot_dimension_numbers<[1], [0], [0], [1], [0, 0, 1, 1], [], []>} : vector<8x32xbf16>, vector<32x16xbf16>, vector<8x16xf32> -> vector<8x16xf32>
    %c0_3 = arith.constant 0 : index
    %c0_4 = arith.constant 0 : index
    %4 = vector.load %arg3[%c0_3, %c0_4] : memref<1x16xf32, #tpu.memory_space<vmem>>, vector<1x16xf32>
    %5 = vector.broadcast %4 : vector<1x16xf32> to vector<8x16xf32>
    %6 = arith.addf %3, %5 : vector<8x16xf32>
    %cst_5 = arith.constant 0.000000e+00 : f32
    %7 = vector.broadcast %cst_5 : f32 to vector<8x16xf32>
    %8 = arith.maximumf %6, %7 : vector<8x16xf32>
    %9 = arith.truncf %8 : vector<8x16xf32> to vector<8x16xbf16>
    %c0_6 = arith.constant 0 : index
    %c0_7 = arith.constant 0 : index
    %10 = vector.load %arg7[%c0_6, %c0_7] : memref<8x16xbf16, #tpu.memory_space<vmem>>, vector<8x16xbf16>
    tpu.vector_store %arg7[%c0_6, %c0_7], %9 {strides = array<i32>} : memref<8x16xbf16, #tpu.memory_space<vmem>>, vector<8x16xbf16>,
    %c0_8 = arith.constant 0 : index
    %c0_9 = arith.constant 0 : index
    %11 = vector.load %arg7[%c0_8, %c0_9] : memref<8x16xbf16, #tpu.memory_space<vmem>>, vector<8x16xbf16>
    %c0_10 = arith.constant 0 : index
    %c0_11 = arith.constant 0 : index
    %12 = vector.load %arg4[%c0_10, %c0_11] : memref<16x128xbf16, #tpu.memory_space<vmem>>, vector<16x128xbf16>
    %cst_12 = arith.constant dense<0.000000e+00> : vector<8x128xf32>
    %13 = tpu.matmul %11, %12, %cst_12 {dimension_numbers = #tpu.dot_dimension_numbers<[1], [0], [0], [1], [0, 0, 1, 1], [], []>} : vector<8x16xbf16>, vector<16x128xbf16>, vector<8x128xf32> -> vector<8x128xf32>
    %c0_13 = arith.constant 0 : index
    %c0_14 = arith.constant 0 : index
    %14 = vector.load %arg5[%c0_13, %c0_14] : memref<1x128xf32, #tpu.memory_space<vmem>>, vector<1x128xf32>
    %15 = vector.broadcast %14 : vector<1x128xf32> to vector<8x128xf32>
    %16 = arith.addf %13, %15 : vector<8x128xf32>
    %c0_15 = arith.constant 0 : index
    %c0_16 = arith.constant 0 : index
    %17 = vector.load %arg6[%c0_15, %c0_16] : memref<8x128xf32, #tpu.memory_space<vmem>>, vector<8x128xf32>
    tpu.vector_store %arg6[%c0_15, %c0_16], %16 {strides = array<i32>} : memref<8x128xf32, #tpu.memory_space<vmem>>, vector<8x128xf32>,
    return
  }
  func.func @transform_0(%arg0: i32) -> (i32, i32) {
    %c0_i32 = arith.constant 0 : i32
    %c0_i32_0 = arith.constant 0 : i32
    return %arg0, %c0_i32 : i32, i32
  }
  func.func @transform_1(%arg0: i32) -> (i32, i32) {
    %c0_i32 = arith.constant 0 : i32
    %c0_i32_0 = arith.constant 0 : i32
    %c0_i32_1 = arith.constant 0 : i32
    return %c0_i32, %c0_i32_0 : i32, i32
  }
  func.func @transform_2(%arg0: i32) -> (i32, i32) {
    %c0_i32 = arith.constant 0 : i32
    %c0_i32_0 = arith.constant 0 : i32
    %c0_i32_1 = arith.constant 0 : i32
    return %c0_i32, %c0_i32_0 : i32, i32
  }
  func.func @transform_3(%arg0: i32) -> (i32, i32) {
    %c0_i32 = arith.constant 0 : i32
    %c0_i32_0 = arith.constant 0 : i32
    %c0_i32_1 = arith.constant 0 : i32
    return %c0_i32, %c0_i32_0 : i32, i32
  }
  func.func @transform_4(%arg0: i32) -> (i32, i32) {
    %c0_i32 = arith.constant 0 : i32
    %c0_i32_0 = arith.constant 0 : i32
    %c0_i32_1 = arith.constant 0 : i32
    return %c0_i32, %c0_i32_0 : i32, i32
  }
  func.func @transform_5(%arg0: i32) -> (i32, i32) {
    %c0_i32 = arith.constant 0 : i32
    %c0_i32_0 = arith.constant 0 : i32
    return %arg0, %c0_i32 : i32, i32
  }
}

</mosaic_0001>

<llo_original>
// kernel: _forward.1
$region0: #{_forward.1}
  #allocation0 [shape = 'u32[]', space=smem, size = 0x4, offset = 0x4, fixed_abs, tag = 'smem constant byte address 0x4 - core index']
  #allocation1 [shape = 'u32[144,128]{1,0:T(1,128)}', space=vmem, size = 0x12000, scoped, tag = 'internal scratch']
  #allocation2 [shape = 'bf16[8,16]{1,0:T(8,128)(2,1)}', space=vmem, size = 0x800, scoped, tag = 'scratch operand']
  %s0 = inlined_call_operand.vmem [shape: f32[16,32], index: 0, kind: input, shape index: {}]
  %s1 = inlined_call_operand.vmem [shape: bf16[32,16], index: 1, kind: input, shape index: {}]
  %s2 = inlined_call_operand.vmem [shape: f32[1,16], index: 2, kind: input, shape index: {}]
  %s3 = inlined_call_operand.vmem [shape: bf16[16,128], index: 3, kind: input, shape index: {}]
  %s4 = inlined_call_operand.vmem [shape: f32[1,128], index: 4, kind: input, shape index: {}]
  %s5 = inlined_call_operand.vmem [shape: f32[16,128], index: 5, kind: output, shape index: {}]
  %s6 = sld [smem:[#allocation0]]
  $region53: #{_forward.1} parent=0
    _
  %s8 = ssub.s32 1, %s6
  %s9 = scalar_select 0, %s8, %s6
  loop: start=0, step=1, limit=4
  $region2: #{_forward.1} parent=0 // loop_pre_header
    _
  $region3: #{_forward.1} parent=0 // loop_header
    %s11 = sphi 0, %s15
    %p12 = scmp.ge.s32.totalorder %s11, 4
    %s21 = sphi 0, %s23
    %s24 = sphi 0, %s21
    %s25 = sphi 0, %s24
    %s41 = sphi 0, %s25
    %s45 = sphi 0, %s45
    %s47 = sphi 0, %s45
    %s48 = sphi 0, %s47
    %s62 = sphi 0, %s48
    %s66 = sphi 0, %s66
    %s68 = sphi 0, %s66
    %s69 = sphi 0, %s68
    %s83 = sphi 0, %s69
    %s87 = sphi 0, %s87
    %s89 = sphi 0, %s87
    %s90 = sphi 0, %s89
    %s104 = sphi 0, %s90
    %s108 = sphi 0, %s108
    %s110 = sphi 0, %s108
    %s111 = sphi 0, %s110
    %s125 = sphi 0, %s111
    %s131 = sphi 0, %s133
    %s134 = sphi 0, %s131
    %s135 = sphi 0, %s134
    %s151 = sphi 0, %s135
  $region4: #{_forward.1} parent=0 // loop_header_branch
    %14 = sbr.rel (%p12) target = $region8
  $region5: #{_forward.1} parent=0 // loop_body
    %s16 = ssub.s32 %s11, 1
    %s17 = ssub.s32 %s11, 2
    %s18 = sadd.s32 %s11, 1
    %s19 = ssub.s32 %s11, %s18
    %p20 = scmp.eq.s32.totalorder %s19, 0
    %s22 = sadd.s32 %s21, 1
    %s23 = scalar_select %p20, %s21, %s22
    %p26 = pneg %p20
    %p27 = scmp.eq.s32.totalorder %s11, 1
    %p28 = por %p26, %p27
    %p29 = scmp.ne.s32.totalorder %s21, %s24
    %p30 = scmp.eq.s32.totalorder %s11, 0
    %p31 = por %p29, %p30
    %p32 = scmp.ne.s32.totalorder %s21, %s24
    %p33 = scmp.eq.s32.totalorder %s16, 1
    %p34 = por %p32, %p33
    %p35 = scmp.ne.s32.totalorder %s24, %s25
    %p36 = scmp.eq.s32.totalorder %s16, 0
    %p37 = por %p35, %p36
    %p38 = scmp.ne.s32.totalorder %s24, %s25
    %p39 = scmp.eq.s32.totalorder %s17, 1
    %p40 = por %p38, %p39
    %p42 = scmp.ne.s32.totalorder %s25, %s41
    %p43 = scmp.eq.s32.totalorder %s17, 0
    %p44 = por %p42, %p43
    %s46 = sadd.s32 %s45, 1
    %p49 = scmp.eq.s32.totalorder %s11, 1
    %p50 = scmp.ne.s32.totalorder %s45, %s47
    %p51 = scmp.eq.s32.totalorder %s11, 0
    %p52 = por %p50, %p51
    %p53 = scmp.ne.s32.totalorder %s45, %s47
    %p54 = scmp.eq.s32.totalorder %s16, 1
    %p55 = por %p53, %p54
    %p56 = scmp.ne.s32.totalorder %s47, %s48
    %p57 = scmp.eq.s32.totalorder %s16, 0
    %p58 = por %p56, %p57
    %p59 = scmp.ne.s32.totalorder %s47, %s48
    %p60 = scmp.eq.s32.totalorder %s17, 1
    %p61 = por %p59, %p60
    %p63 = scmp.ne.s32.totalorder %s48, %s62
    %p64 = scmp.eq.s32.totalorder %s17, 0
    %p65 = por %p63, %p64
    %s67 = sadd.s32 %s66, 1
    %p70 = scmp.eq.s32.totalorder %s11, 1
    %p71 = scmp.ne.s32.totalorder %s66, %s68
    %p72 = scmp.eq.s32.totalorder %s11, 0
    %p73 = por %p71, %p72
    %p74 = scmp.ne.s32.totalorder %s66, %s68
    %p75 = scmp.eq.s32.totalorder %s16, 1
    %p76 = por %p74, %p75
    %p77 = scmp.ne.s32.totalorder %s68, %s69
    %p78 = scmp.eq.s32.totalorder %s16, 0
    %p79 = por %p77, %p78
    %p80 = scmp.ne.s32.totalorder %s68, %s69
    %p81 = scmp.eq.s32.totalorder %s17, 1
    %p82 = por %p80, %p81
    %p84 = scmp.ne.s32.totalorder %s69, %s83
    %p85 = scmp.eq.s32.totalorder %s17, 0
    %p86 = por %p84, %p85
    %s88 = sadd.s32 %s87, 1
    %p91 = scmp.eq.s32.totalorder %s11, 1
    %p92 = scmp.ne.s32.totalorder %s87, %s89
    %p93 = scmp.eq.s32.totalorder %s11, 0
    %p94 = por %p92, %p93
    %p95 = scmp.ne.s32.totalorder %s87, %s89
    %p96 = scmp.eq.s32.totalorder %s16, 1
    %p97 = por %p95, %p96
    %p98 = scmp.ne.s32.totalorder %s89, %s90
    %p99 = scmp.eq.s32.totalorder %s16, 0
    %p100 = por %p98, %p99
    %p101 = scmp.ne.s32.totalorder %s89, %s90
    %p102 = scmp.eq.s32.totalorder %s17, 1
    %p103 = por %p101, %p102
    %p105 = scmp.ne.s32.totalorder %s90, %s104
    %p106 = scmp.eq.s32.totalorder %s17, 0
    %p107 = por %p105, %p106
    %s109 = sadd.s32 %s108, 1
    %p112 = scmp.eq.s32.totalorder %s11, 1
    %p113 = scmp.ne.s32.totalorder %s108, %s110
    %p114 = scmp.eq.s32.totalorder %s11, 0
    %p115 = por %p113, %p114
    %p116 = scmp.ne.s32.totalorder %s108, %s110
    %p117 = scmp.eq.s32.totalorder %s16, 1
    %p118 = por %p116, %p117
    %p119 = scmp.ne.s32.totalorder %s110, %s111
    %p120 = scmp.eq.s32.totalorder %s16, 0
    %p121 = por %p119, %p120
    %p122 = scmp.ne.s32.totalorder %s110, %s111
    %p123 = scmp.eq.s32.totalorder %s17, 1
    %p124 = por %p122, %p123
    %p126 = scmp.ne.s32.totalorder %s111, %s125
    %p127 = scmp.eq.s32.totalorder %s17, 0
    %p128 = por %p126, %p127
    %s129 = ssub.s32 %s11, %s18
    %p130 = scmp.eq.s32.totalorder %s129, 0
    %s132 = sadd.s32 %s131, 1
    %s133 = scalar_select %p130, %s131, %s132
    %p136 = pneg %p130
    %p137 = scmp.eq.s32.totalorder %s11, 1
    %p138 = por %p136, %p137
    %p139 = scmp.ne.s32.totalorder %s131, %s134
    %p140 = scmp.eq.s32.totalorder %s11, 0
    %p141 = por %p139, %p140
    %p142 = scmp.ne.s32.totalorder %s131, %s134
    %p143 = scmp.eq.s32.totalorder %s16, 1
    %p144 = por %p142, %p143
    %p145 = scmp.ne.s32.totalorder %s134, %s135
    %p146 = scmp.eq.s32.totalorder %s16, 0
    %p147 = por %p145, %p146
    %p148 = scmp.ne.s32.totalorder %s134, %s135
    %p149 = scmp.eq.s32.totalorder %s17, 1
    %p150 = por %p148, %p149
    %p152 = scmp.ne.s32.totalorder %s135, %s151
    %p153 = scmp.eq.s32.totalorder %s17, 0
    %p154 = por %p152, %p153
    %p155 = scmp.le.s32.totalorder 1, %s11
    %p156 = scmp.lt.s32.totalorder %s11, 3
    %p157 = pnand %p155, %p156
    %p158 = pneg %p157
    // Predicated region
    $region9: #{_forward.1} parent=5 // pred_check
      _
    $region10: #{_forward.1} parent=5 // pred_check_branch
      %160 = sbr.rel (%p157) target = $region12
    $region11: #{_forward.1} parent=5 // pred_region
      %s161 = ssub.s32 %s11, 1
      // Predicated region
      $region13: #{_forward.1} parent=11 // pred_check
        %p162 = pneg %p58
      $region14: #{_forward.1} parent=11 // pred_check_branch
        %164 = sbr.rel (%p162) target = $region16
      $region15: #{_forward.1} parent=11 // pred_region
        _
      $region16: #{_forward.1} parent=11 // pred_fallthru
        _
      // Predicated region
      $region17: #{_forward.1} parent=11 // pred_check
        %p165 = pneg %p79
      $region18: #{_forward.1} parent=11 // pred_check_branch
        %167 = sbr.rel (%p165) target = $region20
      $region19: #{_forward.1} parent=11 // pred_region
        _
      $region20: #{_forward.1} parent=11 // pred_fallthru
        _
      // Predicated region
      $region21: #{_forward.1} parent=11 // pred_check
        %p168 = pneg %p100
      $region22: #{_forward.1} parent=11 // pred_check_branch
        %170 = sbr.rel (%p168) target = $region24
      $region23: #{_forward.1} parent=11 // pred_region
        _
      $region24: #{_forward.1} parent=11 // pred_fallthru
        _
      // Predicated region
      $region25: #{_forward.1} parent=11 // pred_check
        %p171 = pneg %p121
      $region26: #{_forward.1} parent=11 // pred_check_branch
        %173 = sbr.rel (%p171) target = $region28
      $region27: #{_forward.1} parent=11 // pred_region
        _
      $region28: #{_forward.1} parent=11 // pred_fallthru
        _
    $region12: #{_forward.1} parent=5 // pred_fallthru
      _
    %p174 = scmp.lt.s32.totalorder %s11, 2
    // Predicated region
    $region29: #{_forward.1} parent=5 // pred_check
      %p175 = pneg %p174
    $region30: #{_forward.1} parent=5 // pred_check_branch
      %177 = sbr.rel (%p175) target = $region32
    $region31: #{_forward.1} parent=5 // pred_region
      // Predicated region
      $region33: #{_forward.1} parent=31 // pred_check
        %p178 = pneg %p31
      $region34: #{_forward.1} parent=31 // pred_check_branch
        %180 = sbr.rel (%p178) target = $region36
      $region35: #{_forward.1} parent=31 // pred_region
        %p181 = scmp.lt.s32.totalorder %s11, 1
        %s182 = scalar_select %p181, %s11, 1
        %s183 = smul.addr %s182, 8
        %s184 = scalar_lea.vmem %s0, %s183
      $region36: #{_forward.1} parent=31 // pred_fallthru
        _
    $region32: #{_forward.1} parent=5 // pred_fallthru
      _
    %p185 = scmp.le.s32.totalorder 1, %s11
    %p186 = scmp.lt.s32.totalorder %s11, 3
    %p187 = pnand %p185, %p186
    %p188 = pneg %p187
    // Predicated region
    $region37: #{_forward.1} parent=5 // pred_check
      _
    $region38: #{_forward.1} parent=5 // pred_check_branch
      %190 = sbr.rel (%p187) target = $region40
    $region39: #{_forward.1} parent=5 // pred_region
      %s191 = ssub.s32 %s11, 1
      %p192 = scmp.lt.s32.totalorder %s16, 1
      %s193 = scalar_select %p192, %s16, 1
      %s194 = smul.addr %s193, 8
      %s195 = scalar_lea.vmem %s0, %s194
      %p196 = pneg %p37
      %p197 = pneg %p34
      %p198 = pneg %p58
      %p199 = pneg %p55
      %p200 = pneg %p79
      %p201 = pneg %p76
      %p202 = pneg %p100
      %p203 = pneg %p97
      %p204 = pneg %p121
      %p205 = pneg %p118
      %p206 = pneg %p147
      %p207 = pneg %p144
      %p208 = scmp.lt.s32.totalorder %s16, 1
      %s209 = scalar_select %p208, %s16, 1
      %s210 = smul.addr %s209, 8
      %s211 = scalar_lea.vmem %s5, %s210
      %p212 = scmp.lt.s32.totalorder %s16, 1
      %s213 = scalar_select %p212, %s16, 1
      %s214 = smul.addr %s213, 8
      %s215 = scalar_lea.vmem %s0, %s214
      %p216 = scmp.lt.s32.totalorder %s16, 1
      %s217 = scalar_select %p216, %s16, 1
      %s218 = smul.addr %s217, 8
      %s219 = scalar_lea.vmem %s5, %s218
      %v221 = vld [vmem:[%s215] sm:$0xff]
      %v222 = vpack.c.bf16 %v221, %v221
      %v223 = vld [vmem:[%s1] sm:$0xf]
      %v224 = vld [vmem:[%s1 + $0x4] sm:$0xf]
      %v225 = vld [vmem:[%s1 + $0x8] sm:$0xf]
      %v226 = vld [vmem:[%s1 + $0xc] sm:$0xf]
      %v227 = vld [vmem:[%s2] sm:$0x1]
      %v229 = vlaneseq
      %v230 = vshrl.u32 %v229, 7
      %v231 = vsub.s32 0, %v230
      %v232 = vrot.slane %v227, %v231
      %v238 = vunpack.c.l.b16 %v223
      %v239 = vunpack.c.l.b16 %v224
      %v240 = vunpack.c.l.b16 %v225
      %v241 = vunpack.c.l.b16 %v226
      %v242 = vpack.c.b16 %v239, %v238
      %v243 = vpack.c.b16 %v241, %v240
      %vm246 = vcmask 261120
      %v248 = vsel %vm246, %v222, 0
      %250 = vmatprep.subr.bf16.mxu0 0
      %251 = vmatpush1.bf16.msra.mxu0 %v242
      %252 = vmatprep.subr.bf16.mxu0 0
      %253 = vmatpush1.bf16.msra.mxu0 %v243
      %254 = vmatprep.subr.bf16.mxu0 0
      %255 = vmatpush1.bf16.msra.mxu0 0
      %256 = vmatprep.subr.bf16.mxu0 0
      %257 = vmatpush1.bf16.msra.mxu0 0
      %258 = vmatprep.subr.bf16.mxu0 0
      %259 = vmatpush1.bf16.msra.mxu0 0
      %260 = vmatprep.subr.bf16.mxu0 0
      %261 = vmatpush1.bf16.msra.mxu0 0
      %262 = vmatprep.subr.bf16.mxu0 0
      %263 = vmatpush1.bf16.msra.mxu0 0
      %264 = vmatprep.subr.bf16.mxu0 0
      %265 = vmatpush1.bf16.msra.mxu0 0
      %266 = vmatprep.subr.bf16.mxu0 0
      %267 = vmatpush1.bf16.msra.mxu0 0
      %268 = vmatprep.subr.bf16.mxu0 0
      %269 = vmatpush1.bf16.msra.mxu0 0
      %270 = vmatprep.subr.bf16.mxu0 0
      %271 = vmatpush1.bf16.msra.mxu0 0
      %272 = vmatprep.subr.bf16.mxu0 0
      %273 = vmatpush1.bf16.msra.mxu0 0
      %274 = vmatprep.subr.bf16.mxu0 0
      %275 = vmatpush1.bf16.msra.mxu0 0
      %276 = vmatprep.subr.bf16.mxu0 0
      %277 = vmatpush1.bf16.msra.mxu0 0
      %278 = vmatprep.subr.bf16.mxu0 0
      %279 = vmatpush1.bf16.msra.mxu0 0
      %280 = vmatprep.subr.bf16.mxu0 0
      %281 = vmatpush1.bf16.msra.mxu0 0
      %282 = vmatprep.mubr.bf16.mxu0 0
      %283 = vmatmul.mubr.bf16.gmra.mrb[0].mxu0 %v248
      %v284 = vpop.f32.mrb[0].mxu0
      %v285 = vadd.f32 %v232, %v284
      %v286 = vpop.f32.mrb[0].mxu0
      %v287 = vpop.f32.mrb[0].mxu0
      %v288 = vpop.f32.mrb[0].mxu0
      %289 = vdwg.mxu0
      %v290 = vmax.f32 %v285, 0.0
      %v291 = vpack.c.bf16 %v290, %v290
      %vm292 = vcmask 125952
      %293 = vst.msk [vmem:[#allocation2] sm:$0xf] %vm292, %v291
      %v294 = vld [vmem:[#allocation2] sm:$0xf]
      %v295 = vld [vmem:[%s3] sm:$0xf]
      %v296 = vld [vmem:[%s3 + $0x4] sm:$0xf]
      %v297 = vld [vmem:[%s4] sm:$0x1]
      %v299 = vlaneseq
      %v300 = vshrl.u32 %v299, 7
      %v301 = vsub.s32 0, %v300
      %v302 = vrot.slane %v297, %v301
      %v306 = vunpack.c.l.b16 %v295
      %v307 = vunpack.c.l.b16 %v296
      %v308 = vpack.c.b16 %v307, %v306
      %vm310 = vcmask 130048
      %v312 = vsel %vm310, %v294, 0
      %314 = vmatprep.subr.bf16.mxu0 0
      %315 = vmatpush1.bf16.msra.mxu0 %v308
      %316 = vmatprep.subr.bf16.mxu0 0
      %317 = vmatpush1.bf16.msra.mxu0 0
      %318 = vmatprep.subr.bf16.mxu0 0
      %319 = vmatpush1.bf16.msra.mxu0 0
      %320 = vmatprep.subr.bf16.mxu0 0
      %321 = vmatpush1.bf16.msra.mxu0 0
      %322 = vmatprep.subr.bf16.mxu0 0
      %323 = vmatpush1.bf16.msra.mxu0 0
      %324 = vmatprep.subr.bf16.mxu0 0
      %325 = vmatpush1.bf16.msra.mxu0 0
      %326 = vmatprep.subr.bf16.mxu0 0
      %327 = vmatpush1.bf16.msra.mxu0 0
      %328 = vmatprep.subr.bf16.mxu0 0
      %329 = vmatpush1.bf16.msra.mxu0 0
      %330 = vmatprep.subr.bf16.mxu0 0
      %331 = vmatpush1.bf16.msra.mxu0 0
      %332 = vmatprep.subr.bf16.mxu0 0
      %333 = vmatpush1.bf16.msra.mxu0 0
      %334 = vmatprep.subr.bf16.mxu0 0
      %335 = vmatpush1.bf16.msra.mxu0 0
      %336 = vmatprep.subr.bf16.mxu0 0
      %337 = vmatpush1.bf16.msra.mxu0 0
      %338 = vmatprep.subr.bf16.mxu0 0
      %339 = vmatpush1.bf16.msra.mxu0 0
      %340 = vmatprep.subr.bf16.mxu0 0
      %341 = vmatpush1.bf16.msra.mxu0 0
      %342 = vmatprep.subr.bf16.mxu0 0
      %343 = vmatpush1.bf16.msra.mxu0 0
      %344 = vmatprep.subr.bf16.mxu0 0
      %345 = vmatpush1.bf16.msra.mxu0 0
      %346 = vmatprep.mubr.bf16.mxu0 0
      %347 = vmatmul.mubr.bf16.gmra.mrb[0].mxu0 %v312
      %v348 = vpop.f32.mrb[0].mxu0
      %v349 = vadd.f32 %v302, %v348
      %v350 = vpop.f32.mrb[0].mxu0
      %v351 = vpop.f32.mrb[0].mxu0
      %v352 = vpop.f32.mrb[0].mxu0
      %353 = vdwg.mxu0
      %354 = vst [vmem:[%s219] sm:$0xff] %v349
      %p355 = scmp.lt.s32.totalorder %s16, 1
      %s356 = scalar_select %p355, %s16, 1
      %s357 = smul.addr %s356, 8
      %s358 = scalar_lea.vmem %s5, %s357
      // Predicated region
      $region41: #{_forward.1} parent=39 // pred_check
        %p359 = pneg %p144
      $region42: #{_forward.1} parent=39 // pred_check_branch
        %361 = sbr.rel (%p359) target = $region44
      $region43: #{_forward.1} parent=39 // pred_region
        _
      $region44: #{_forward.1} parent=39 // pred_fallthru
        _
    $region40: #{_forward.1} parent=5 // pred_fallthru
      _
    %p362 = scmp.le.s32.totalorder 2, %s11
    // Predicated region
    $region45: #{_forward.1} parent=5 // pred_check
      %p363 = pneg %p362
    $region46: #{_forward.1} parent=5 // pred_check_branch
      %365 = sbr.rel (%p363) target = $region48
    $region47: #{_forward.1} parent=5 // pred_region
      %s366 = ssub.s32 %s11, 2
      // Predicated region
      $region49: #{_forward.1} parent=47 // pred_check
        %p367 = pneg %p150
      $region50: #{_forward.1} parent=47 // pred_check_branch
        %369 = sbr.rel (%p367) target = $region52
      $region51: #{_forward.1} parent=47 // pred_region
        %p370 = scmp.lt.s32.totalorder %s17, 1
        %s371 = scalar_select %p370, %s17, 1
        %s372 = smul.addr %s371, 8
        %s373 = scalar_lea.vmem %s5, %s372
      $region52: #{_forward.1} parent=47 // pred_fallthru
        _
    $region48: #{_forward.1} parent=5 // pred_fallthru
      _
  $region6: #{_forward.1} parent=0 // loop_footer
    %s15 = sadd.s32 1, %s11
  $region7: #{_forward.1} parent=0 // loop_footer_branch
    %10 = sbr.rel target = $region3
  $region8: #{_forward.1} parent=0 // loop_exit
    _

// kernel: _forward.1
$region0: #{_forward.1}
  #allocation0 [shape = 'u32[]', space=smem, size = 0x4, offset = 0x4, fixed_abs, tag = 'smem constant byte address 0x4 - core index']
  #allocation1 [shape = 'u32[144,128]{1,0:T(1,128)}', space=vmem, size = 0x12000, scoped, tag = 'internal scratch']
  #allocation2 [shape = 'bf16[8,16]{1,0:T(8,128)(2,1)}', space=vmem, size = 0x800, scoped, tag = 'scratch operand']
  %s0 = inlined_call_operand.vmem [shape: f32[16,32], index: 0, kind: input, shape index: {}]
  %s1 = inlined_call_operand.vmem [shape: bf16[32,16], index: 1, kind: input, shape index: {}]
  %s2 = inlined_call_operand.vmem [shape: f32[1,16], index: 2, kind: input, shape index: {}]
  %s3 = inlined_call_operand.vmem [shape: bf16[16,128], index: 3, kind: input, shape index: {}]
  %s4 = inlined_call_operand.vmem [shape: f32[1,128], index: 4, kind: input, shape index: {}]
  %s5 = inlined_call_operand.vmem [shape: f32[16,128], index: 5, kind: output, shape index: {}]
  %s6 = sld [smem:[#allocation0]]
  $region53: #{_forward.1} parent=0
    _
  %s8 = ssub.s32 1, %s6
  %s9 = scalar_select 0, %s8, %s6
  loop: start=0, step=1, limit=4
  $region2: #{_forward.1} parent=0 // loop_pre_header
    _
  $region3: #{_forward.1} parent=0 // loop_header
    %s11 = sphi 0, %s15
    %p12 = scmp.ge.s32.totalorder %s11, 4
    %s21 = sphi 0, %s23
    %s24 = sphi 0, %s21
    %s25 = sphi 0, %s24
    %s41 = sphi 0, %s25
    %s45 = sphi 0, %s45
    %s47 = sphi 0, %s45
    %s48 = sphi 0, %s47
    %s62 = sphi 0, %s48
    %s66 = sphi 0, %s66
    %s68 = sphi 0, %s66
    %s69 = sphi 0, %s68
    %s83 = sphi 0, %s69
    %s87 = sphi 0, %s87
    %s89 = sphi 0, %s87
    %s90 = sphi 0, %s89
    %s104 = sphi 0, %s90
    %s108 = sphi 0, %s108
    %s110 = sphi 0, %s108
    %s111 = sphi 0, %s110
    %s125 = sphi 0, %s111
    %s131 = sphi 0, %s133
    %s134 = sphi 0, %s131
    %s135 = sphi 0, %s134
    %s151 = sphi 0, %s135
  $region4: #{_forward.1} parent=0 // loop_header_branch
    %14 = sbr.rel (%p12) target = $region8
  $region5: #{_forward.1} parent=0 // loop_body
    %s16 = ssub.s32 %s11, 1
    %s17 = ssub.s32 %s11, 2
    %s18 = sadd.s32 %s11, 1
    %s19 = ssub.s32 %s11, %s18
    %p20 = scmp.eq.s32.totalorder %s19, 0
    %s22 = sadd.s32 %s21, 1
    %s23 = scalar_select %p20, %s21, %s22
    %p26 = pneg %p20
    %p27 = scmp.eq.s32.totalorder %s11, 1
    %p28 = por %p26, %p27
    %p29 = scmp.ne.s32.totalorder %s21, %s24
    %p30 = scmp.eq.s32.totalorder %s11, 0
    %p31 = por %p29, %p30
    %p32 = scmp.ne.s32.totalorder %s21, %s24
    %p33 = scmp.eq.s32.totalorder %s16, 1
    %p34 = por %p32, %p33
    %p35 = scmp.ne.s32.totalorder %s24, %s25
    %p36 = scmp.eq.s32.totalorder %s16, 0
    %p37 = por %p35, %p36
    %p38 = scmp.ne.s32.totalorder %s24, %s25
    %p39 = scmp.eq.s32.totalorder %s17, 1
    %p40 = por %p38, %p39
    %p42 = scmp.ne.s32.totalorder %s25, %s41
    %p43 = scmp.eq.s32.totalorder %s17, 0
    %p44 = por %p42, %p43
    %s46 = sadd.s32 %s45, 1
    %p49 = scmp.eq.s32.totalorder %s11, 1
    %p50 = scmp.ne.s32.totalorder %s45, %s47
    %p51 = scmp.eq.s32.totalorder %s11, 0
    %p52 = por %p50, %p51
    %p53 = scmp.ne.s32.totalorder %s45, %s47
    %p54 = scmp.eq.s32.totalorder %s16, 1
    %p55 = por %p53, %p54
    %p56 = scmp.ne.s32.totalorder %s47, %s48
    %p57 = scmp.eq.s32.totalorder %s16, 0
    %p58 = por %p56, %p57
    %p59 = scmp.ne.s32.totalorder %s47, %s48
    %p60 = scmp.eq.s32.totalorder %s17, 1
    %p61 = por %p59, %p60
    %p63 = scmp.ne.s32.totalorder %s48, %s62
    %p64 = scmp.eq.s32.totalorder %s17, 0
    %p65 = por %p63, %p64
    %s67 = sadd.s32 %s66, 1
    %p70 = scmp.eq.s32.totalorder %s11, 1
    %p71 = scmp.ne.s32.totalorder %s66, %s68
    %p72 = scmp.eq.s32.totalorder %s11, 0
    %p73 = por %p71, %p72
    %p74 = scmp.ne.s32.totalorder %s66, %s68
    %p75 = scmp.eq.s32.totalorder %s16, 1
    %p76 = por %p74, %p75
    %p77 = scmp.ne.s32.totalorder %s68, %s69
    %p78 = scmp.eq.s32.totalorder %s16, 0
    %p79 = por %p77, %p78
    %p80 = scmp.ne.s32.totalorder %s68, %s69
    %p81 = scmp.eq.s32.totalorder %s17, 1
    %p82 = por %p80, %p81
    %p84 = scmp.ne.s32.totalorder %s69, %s83
    %p85 = scmp.eq.s32.totalorder %s17, 0
    %p86 = por %p84, %p85
    %s88 = sadd.s32 %s87, 1
    %p91 = scmp.eq.s32.totalorder %s11, 1
    %p92 = scmp.ne.s32.totalorder %s87, %s89
    %p93 = scmp.eq.s32.totalorder %s11, 0
    %p94 = por %p92, %p93
    %p95 = scmp.ne.s32.totalorder %s87, %s89
    %p96 = scmp.eq.s32.totalorder %s16, 1
    %p97 = por %p95, %p96
    %p98 = scmp.ne.s32.totalorder %s89, %s90
    %p99 = scmp.eq.s32.totalorder %s16, 0
    %p100 = por %p98, %p99
    %p101 = scmp.ne.s32.totalorder %s89, %s90
    %p102 = scmp.eq.s32.totalorder %s17, 1
    %p103 = por %p101, %p102
    %p105 = scmp.ne.s32.totalorder %s90, %s104
    %p106 = scmp.eq.s32.totalorder %s17, 0
    %p107 = por %p105, %p106
    %s109 = sadd.s32 %s108, 1
    %p112 = scmp.eq.s32.totalorder %s11, 1
    %p113 = scmp.ne.s32.totalorder %s108, %s110
    %p114 = scmp.eq.s32.totalorder %s11, 0
    %p115 = por %p113, %p114
    %p116 = scmp.ne.s32.totalorder %s108, %s110
    %p117 = scmp.eq.s32.totalorder %s16, 1
    %p118 = por %p116, %p117
    %p119 = scmp.ne.s32.totalorder %s110, %s111
    %p120 = scmp.eq.s32.totalorder %s16, 0
    %p121 = por %p119, %p120
    %p122 = scmp.ne.s32.totalorder %s110, %s111
    %p123 = scmp.eq.s32.totalorder %s17, 1
    %p124 = por %p122, %p123
    %p126 = scmp.ne.s32.totalorder %s111, %s125
    %p127 = scmp.eq.s32.totalorder %s17, 0
    %p128 = por %p126, %p127
    %s129 = ssub.s32 %s11, %s18
    %p130 = scmp.eq.s32.totalorder %s129, 0
    %s132 = sadd.s32 %s131, 1
    %s133 = scalar_select %p130, %s131, %s132
    %p136 = pneg %p130
    %p137 = scmp.eq.s32.totalorder %s11, 1
    %p138 = por %p136, %p137
    %p139 = scmp.ne.s32.totalorder %s131, %s134
    %p140 = scmp.eq.s32.totalorder %s11, 0
    %p141 = por %p139, %p140
    %p142 = scmp.ne.s32.totalorder %s131, %s134
    %p143 = scmp.eq.s32.totalorder %s16, 1
    %p144 = por %p142, %p143
    %p145 = scmp.ne.s32.totalorder %s134, %s135
    %p146 = scmp.eq.s32.totalorder %s16, 0
    %p147 = por %p145, %p146
    %p148 = scmp.ne.s32.totalorder %s134, %s135
    %p149 = scmp.eq.s32.totalorder %s17, 1
    %p150 = por %p148, %p149
    %p152 = scmp.ne.s32.totalorder %s135, %s151
    %p153 = scmp.eq.s32.totalorder %s17, 0
    %p154 = por %p152, %p153
    %p155 = scmp.le.s32.totalorder 1, %s11
    %p156 = scmp.lt.s32.totalorder %s11, 3
    %p157 = pnand %p155, %p156
    %p158 = pneg %p157
    // Predicated region
    $region9: #{_forward.1} parent=5 // pred_check
      _
    $region10: #{_forward.1} parent=5 // pred_check_branch
      %160 = sbr.rel (%p157) target = $region12
    $region11: #{_forward.1} parent=5 // pred_region
      %s161 = ssub.s32 %s11, 1
      // Predicated region
      $region13: #{_forward.1} parent=11 // pred_check
        %p162 = pneg %p58
      $region14: #{_forward.1} parent=11 // pred_check_branch
        %164 = sbr.rel (%p162) target = $region16
      $region15: #{_forward.1} parent=11 // pred_region
        _
      $region16: #{_forward.1} parent=11 // pred_fallthru
        _
      // Predicated region
      $region17: #{_forward.1} parent=11 // pred_check
        %p165 = pneg %p79
      $region18: #{_forward.1} parent=11 // pred_check_branch
        %167 = sbr.rel (%p165) target = $region20
      $region19: #{_forward.1} parent=11 // pred_region
        _
      $region20: #{_forward.1} parent=11 // pred_fallthru
        _
      // Predicated region
      $region21: #{_forward.1} parent=11 // pred_check
        %p168 = pneg %p100
      $region22: #{_forward.1} parent=11 // pred_check_branch
        %170 = sbr.rel (%p168) target = $region24
      $region23: #{_forward.1} parent=11 // pred_region
        _
      $region24: #{_forward.1} parent=11 // pred_fallthru
        _
      // Predicated region
      $region25: #{_forward.1} parent=11 // pred_check
        %p171 = pneg %p121
      $region26: #{_forward.1} parent=11 // pred_check_branch
        %173 = sbr.rel (%p171) target = $region28
      $region27: #{_forward.1} parent=11 // pred_region
        _
      $region28: #{_forward.1} parent=11 // pred_fallthru
        _
    $region12: #{_forward.1} parent=5 // pred_fallthru
      _
    %p174 = scmp.lt.s32.totalorder %s11, 2
    // Predicated region
    $region29: #{_forward.1} parent=5 // pred_check
      %p175 = pneg %p174
    $region30: #{_forward.1} parent=5 // pred_check_branch
      %177 = sbr.rel (%p175) target = $region32
    $region31: #{_forward.1} parent=5 // pred_region
      // Predicated region
      $region33: #{_forward.1} parent=31 // pred_check
        %p178 = pneg %p31
      $region34: #{_forward.1} parent=31 // pred_check_branch
        %180 = sbr.rel (%p178) target = $region36
      $region35: #{_forward.1} parent=31 // pred_region
        %p181 = scmp.lt.s32.totalorder %s11, 1
        %s182 = scalar_select %p181, %s11, 1
        %s183 = smul.addr %s182, 8
        %s184 = scalar_lea.vmem %s0, %s183
      $region36: #{_forward.1} parent=31 // pred_fallthru
        _
    $region32: #{_forward.1} parent=5 // pred_fallthru
      _
    %p185 = scmp.le.s32.totalorder 1, %s11
    %p186 = scmp.lt.s32.totalorder %s11, 3
    %p187 = pnand %p185, %p186
    %p188 = pneg %p187
    // Predicated region
    $region37: #{_forward.1} parent=5 // pred_check
      _
    $region38: #{_forward.1} parent=5 // pred_check_branch
      %190 = sbr.rel (%p187) target = $region40
    $region39: #{_forward.1} parent=5 // pred_region
      %s191 = ssub.s32 %s11, 1
      %p192 = scmp.lt.s32.totalorder %s16, 1
      %s193 = scalar_select %p192, %s16, 1
      %s194 = smul.addr %s193, 8
      %s195 = scalar_lea.vmem %s0, %s194
      %p196 = pneg %p37
      %p197 = pneg %p34
      %p198 = pneg %p58
      %p199 = pneg %p55
      %p200 = pneg %p79
      %p201 = pneg %p76
      %p202 = pneg %p100
      %p203 = pneg %p97
      %p204 = pneg %p121
      %p205 = pneg %p118
      %p206 = pneg %p147
      %p207 = pneg %p144
      %p208 = scmp.lt.s32.totalorder %s16, 1
      %s209 = scalar_select %p208, %s16, 1
      %s210 = smul.addr %s209, 8
      %s211 = scalar_lea.vmem %s5, %s210
      %p212 = scmp.lt.s32.totalorder %s16, 1
      %s213 = scalar_select %p212, %s16, 1
      %s214 = smul.addr %s213, 8
      %s215 = scalar_lea.vmem %s0, %s214
      %p216 = scmp.lt.s32.totalorder %s16, 1
      %s217 = scalar_select %p216, %s16, 1
      %s218 = smul.addr %s217, 8
      %s219 = scalar_lea.vmem %s5, %s218
      %v221 = vld [vmem:[%s215] sm:$0xff]
      %v222 = vpack.c.bf16 %v221, %v221
      %v223 = vld [vmem:[%s1] sm:$0xf]
      %v224 = vld [vmem:[%s1 + $0x4] sm:$0xf]
      %v225 = vld [vmem:[%s1 + $0x8] sm:$0xf]
      %v226 = vld [vmem:[%s1 + $0xc] sm:$0xf]
      %v227 = vld [vmem:[%s2] sm:$0x1]
      %v229 = vlaneseq
      %v230 = vshrl.u32 %v229, 7
      %v231 = vsub.s32 0, %v230
      %v232 = vrot.slane %v227, %v231
      %v238 = vunpack.c.l.b16 %v223
      %v239 = vunpack.c.l.b16 %v224
      %v240 = vunpack.c.l.b16 %v225
      %v241 = vunpack.c.l.b16 %v226
      %v242 = vpack.c.b16 %v239, %v238
      %v243 = vpack.c.b16 %v241, %v240
      %vm246 = vcmask 261120
      %v248 = vsel %vm246, %v222, 0
      %250 = vmatprep.subr.bf16.mxu0 0
      %251 = vmatpush1.bf16.msra.mxu0 %v242
      %252 = vmatprep.subr.bf16.mxu0 0
      %253 = vmatpush1.bf16.msra.mxu0 %v243
      %254 = vmatprep.subr.bf16.mxu0 0
      %255 = vmatpush1.bf16.msra.mxu0 0
      %256 = vmatprep.subr.bf16.mxu0 0
      %257 = vmatpush1.bf16.msra.mxu0 0
      %258 = vmatprep.subr.bf16.mxu0 0
      %259 = vmatpush1.bf16.msra.mxu0 0
      %260 = vmatprep.subr.bf16.mxu0 0
      %261 = vmatpush1.bf16.msra.mxu0 0
      %262 = vmatprep.subr.bf16.mxu0 0
      %263 = vmatpush1.bf16.msra.mxu0 0
      %264 = vmatprep.subr.bf16.mxu0 0
      %265 = vmatpush1.bf16.msra.mxu0 0
      %266 = vmatprep.subr.bf16.mxu0 0
      %267 = vmatpush1.bf16.msra.mxu0 0
      %268 = vmatprep.subr.bf16.mxu0 0
      %269 = vmatpush1.bf16.msra.mxu0 0
      %270 = vmatprep.subr.bf16.mxu0 0
      %271 = vmatpush1.bf16.msra.mxu0 0
      %272 = vmatprep.subr.bf16.mxu0 0
      %273 = vmatpush1.bf16.msra.mxu0 0
      %274 = vmatprep.subr.bf16.mxu0 0
      %275 = vmatpush1.bf16.msra.mxu0 0
      %276 = vmatprep.subr.bf16.mxu0 0
      %277 = vmatpush1.bf16.msra.mxu0 0
      %278 = vmatprep.subr.bf16.mxu0 0
      %279 = vmatpush1.bf16.msra.mxu0 0
      %280 = vmatprep.subr.bf16.mxu0 0
      %281 = vmatpush1.bf16.msra.mxu0 0
      %282 = vmatprep.mubr.bf16.mxu0 0
      %283 = vmatmul.mubr.bf16.gmra.mrb[0].mxu0 %v248
      %v284 = vpop.f32.mrb[0].mxu0
      %v285 = vadd.f32 %v232, %v284
      %v286 = vpop.f32.mrb[0].mxu0
      %v287 = vpop.f32.mrb[0].mxu0
      %v288 = vpop.f32.mrb[0].mxu0
      %289 = vdwg.mxu0
      %v290 = vmax.f32 %v285, 0.0
      %v291 = vpack.c.bf16 %v290, %v290
      %vm292 = vcmask 125952
      %293 = vst.msk [vmem:[#allocation2] sm:$0xf] %vm292, %v291
      %v294 = vld [vmem:[#allocation2] sm:$0xf]
      %v295 = vld [vmem:[%s3] sm:$0xf]
      %v296 = vld [vmem:[%s3 + $0x4] sm:$0xf]
      %v297 = vld [vmem:[%s4] sm:$0x1]
      %v299 = vlaneseq
      %v300 = vshrl.u32 %v299, 7
      %v301 = vsub.s32 0, %v300
      %v302 = vrot.slane %v297, %v301
      %v306 = vunpack.c.l.b16 %v295
      %v307 = vunpack.c.l.b16 %v296
      %v308 = vpack.c.b16 %v307, %v306
      %vm310 = vcmask 130048
      %v312 = vsel %vm310, %v294, 0
      %314 = vmatprep.subr.bf16.mxu0 0
      %315 = vmatpush1.bf16.msra.mxu0 %v308
      %316 = vmatprep.subr.bf16.mxu0 0
      %317 = vmatpush1.bf16.msra.mxu0 0
      %318 = vmatprep.subr.bf16.mxu0 0
      %319 = vmatpush1.bf16.msra.mxu0 0
      %320 = vmatprep.subr.bf16.mxu0 0
      %321 = vmatpush1.bf16.msra.mxu0 0
      %322 = vmatprep.subr.bf16.mxu0 0
      %323 = vmatpush1.bf16.msra.mxu0 0
      %324 = vmatprep.subr.bf16.mxu0 0
      %325 = vmatpush1.bf16.msra.mxu0 0
      %326 = vmatprep.subr.bf16.mxu0 0
      %327 = vmatpush1.bf16.msra.mxu0 0
      %328 = vmatprep.subr.bf16.mxu0 0
      %329 = vmatpush1.bf16.msra.mxu0 0
      %330 = vmatprep.subr.bf16.mxu0 0
      %331 = vmatpush1.bf16.msra.mxu0 0
      %332 = vmatprep.subr.bf16.mxu0 0
      %333 = vmatpush1.bf16.msra.mxu0 0
      %334 = vmatprep.subr.bf16.mxu0 0
      %335 = vmatpush1.bf16.msra.mxu0 0
      %336 = vmatprep.subr.bf16.mxu0 0
      %337 = vmatpush1.bf16.msra.mxu0 0
      %338 = vmatprep.subr.bf16.mxu0 0
      %339 = vmatpush1.bf16.msra.mxu0 0
      %340 = vmatprep.subr.bf16.mxu0 0
      %341 = vmatpush1.bf16.msra.mxu0 0
      %342 = vmatprep.subr.bf16.mxu0 0
      %343 = vmatpush1.bf16.msra.mxu0 0
      %344 = vmatprep.subr.bf16.mxu0 0
      %345 = vmatpush1.bf16.msra.mxu0 0
      %346 = vmatprep.mubr.bf16.mxu0 0
      %347 = vmatmul.mubr.bf16.gmra.mrb[0].mxu0 %v312
      %v348 = vpop.f32.mrb[0].mxu0
      %v349 = vadd.f32 %v302, %v348
      %v350 = vpop.f32.mrb[0].mxu0
      %v351 = vpop.f32.mrb[0].mxu0
      %v352 = vpop.f32.mrb[0].mxu0
      %353 = vdwg.mxu0
      %354 = vst [vmem:[%s219] sm:$0xff] %v349
      %p355 = scmp.lt.s32.totalorder %s16, 1
      %s356 = scalar_select %p355, %s16, 1
      %s357 = smul.addr %s356, 8
      %s358 = scalar_lea.vmem %s5, %s357
      // Predicated region
      $region41: #{_forward.1} parent=39 // pred_check
        %p359 = pneg %p144
      $region42: #{_forward.1} parent=39 // pred_check_branch
        %361 = sbr.rel (%p359) target = $region44
      $region43: #{_forward.1} parent=39 // pred_region
        _
      $region44: #{_forward.1} parent=39 // pred_fallthru
        _
    $region40: #{_forward.1} parent=5 // pred_fallthru
      _
    %p362 = scmp.le.s32.totalorder 2, %s11
    // Predicated region
    $region45: #{_forward.1} parent=5 // pred_check
      %p363 = pneg %p362
    $region46: #{_forward.1} parent=5 // pred_check_branch
      %365 = sbr.rel (%p363) target = $region48
    $region47: #{_forward.1} parent=5 // pred_region
      %s366 = ssub.s32 %s11, 2
      // Predicated region
      $region49: #{_forward.1} parent=47 // pred_check
        %p367 = pneg %p150
      $region50: #{_forward.1} parent=47 // pred_check_branch
        %369 = sbr.rel (%p367) target = $region52
      $region51: #{_forward.1} parent=47 // pred_region
        %p370 = scmp.lt.s32.totalorder %s17, 1
        %s371 = scalar_select %p370, %s17, 1
        %s372 = smul.addr %s371, 8
        %s373 = scalar_lea.vmem %s5, %s372
      $region52: #{_forward.1} parent=47 // pred_fallthru
        _
    $region48: #{_forward.1} parent=5 // pred_fallthru
      _
  $region6: #{_forward.1} parent=0 // loop_footer
    %s15 = sadd.s32 1, %s11
  $region7: #{_forward.1} parent=0 // loop_footer_branch
    %10 = sbr.rel target = $region3
  $region8: #{_forward.1} parent=0 // loop_exit
    _

</llo_original>
